<compile_context>
chip_gen: v7x
topology: tpu7x:2x2x1
jax: 0.10.0
libtpu: 0.0.40
codegen_flags: <defaults>
</compile_context>

<pallas_src>
import functools

import jax
import jax.numpy as jnp
from jax.experimental import pallas as pl
from jax.experimental.pallas import tpu as pltpu

INPUT_SIZE = 384
H1 = 128
H2 = 64
OUTPUT_SIZE = 30


def _round_up(x, m):
    return ((x + m - 1) // m) * m


def mlp_kernel(x_ref, w1_ref, b1_ref, w2_ref, b2_ref, w3_ref, b3_ref, o_ref):
    # x arrives as f32 straight from HBM; cast to bf16 here (VPU, hidden under
    # the input DMA) instead of a separate XLA cast pass in the wrapper.
    x = x_ref[...].astype(jnp.bfloat16)

    # layer1: bf16 MXU matmul with f32 accumulation; bias + ReLU in f32 (VPU).
    h = jnp.dot(x, w1_ref[...], preferred_element_type=jnp.float32)
    h = jnp.maximum(h + b1_ref[...], 0.0)

    # layer2
    h = jnp.dot(h.astype(jnp.bfloat16), w2_ref[...],
                preferred_element_type=jnp.float32)
    h = jnp.maximum(h + b2_ref[...], 0.0)

    # layer3: store the true 30 output lanes directly (masked vst is free here
    # -- store slots are idle in this DMA-bound kernel) -> no 128-lane write
    # amplification and no post-kernel slice.
    y = jnp.dot(h.astype(jnp.bfloat16), w3_ref[...],
                preferred_element_type=jnp.float32)
    o_ref[...] = (y + b3_ref[...]).astype(o_ref.dtype)


def prepare_params(params):
    """One-time parameter prep, hoisted out of the per-call forward.

    Weights cast to bf16 for the MXU; biases stay f32 for the VPU epilogue.
    """
    w1, b1, w2, b2, w3, b3 = params
    return (w1.astype(jnp.bfloat16), b1,
            w2.astype(jnp.bfloat16), b2,
            w3.astype(jnp.bfloat16), b3)


@functools.partial(jax.jit, static_argnames=("batch_tile",))
def nn_clf_bert_forward(x, prepared_params, *, batch_tile=2048):
    """x: [B, 384] float32 -> [B, 30] float32."""
    w1, b1, w2, b2, w3, b3 = prepared_params
    B = x.shape[0]

    # Batch tile: large (amortizes per-grid-step overhead), multiple of 128,
    # but never wildly bigger than B.  On v7x keep >= 2 parallel grid steps
    # when B >= 256 so both TensorCores stream batch tiles.
    bt = min(batch_tile, _round_up(B, 128))
    if B >= 256:
        bt = min(bt, _round_up((B + 1) // 2, 128))
    grid = (pl.cdiv(B, bt),)

    weight_spec = lambda shape: pl.BlockSpec(shape, lambda i: (0, 0))

    flops = 2 * B * (INPUT_SIZE * H1 + H1 * H2 + H2 * OUTPUT_SIZE)
    bytes_accessed = (
        B * INPUT_SIZE * 4                                         # x (f32)
        + B * OUTPUT_SIZE * 4                                      # out (f32)
        + (INPUT_SIZE * H1 + H1 * H2 + H2 * OUTPUT_SIZE) * 2       # weights bf16
        + (H1 + H2 + OUTPUT_SIZE) * 4                              # biases f32
    )

    out = pl.pallas_call(
        mlp_kernel,
        out_shape=jax.ShapeDtypeStruct((B, OUTPUT_SIZE), jnp.float32),
        grid_spec=pltpu.PrefetchScalarGridSpec(
            num_scalar_prefetch=0,
            grid=grid,
            in_specs=[
                pl.BlockSpec((bt, INPUT_SIZE), lambda i: (i, 0)),   # x (f32)
                weight_spec((INPUT_SIZE, H1)),                      # w1 [in,out]
                weight_spec((1, H1)),                               # b1
                weight_spec((H1, H2)),                              # w2
                weight_spec((1, H2)),                               # b2
                weight_spec((H2, OUTPUT_SIZE)),                     # w3
                weight_spec((1, OUTPUT_SIZE)),                      # b3
            ],
            out_specs=pl.BlockSpec((bt, OUTPUT_SIZE), lambda i: (i, 0)),
        ),
        compiler_params=pltpu.CompilerParams(
            dimension_semantics=("parallel",),
        ),
        cost_estimate=pl.CostEstimate(
            flops=flops, transcendentals=0, bytes_accessed=bytes_accessed),
    )(x, w1, b1, w2, b2, w3, b3)

    return out


def init_params(key):
    """Deterministic synthetic parameters with nn.Linear-like init.

    PyTorch stores W as [out, in]; we keep the kernel-friendly transpose
    [in, out].  Uniform(-1/sqrt(fan_in), 1/sqrt(fan_in)) like nn.Linear.
    """
    ks = jax.random.split(key, 6)

    def linear(kw, kb, fan_in, fan_out):
        bound = 1.0 / jnp.sqrt(jnp.float32(fan_in))
        w = jax.random.uniform(kw, (fan_in, fan_out), jnp.float32, -bound, bound)
        b = jax.random.uniform(kb, (1, fan_out), jnp.float32, -bound, bound)
        return w, b

    w1, b1 = linear(ks[0], ks[1], INPUT_SIZE, H1)
    w2, b2 = linear(ks[2], ks[3], H1, H2)
    w3, b3 = linear(ks[4], ks[5], H2, OUTPUT_SIZE)
    return (w1, b1, w2, b2, w3, b3)


def reference_forward(x, params):
    w1, b1, w2, b2, w3, b3 = params
    h = jnp.maximum(x @ w1 + b1, 0.0)
    h = jnp.maximum(h @ w2 + b2, 0.0)
    return h @ w3 + b3


if __name__ == "__main__":
    key = jax.random.PRNGKey(0)
    k_x1, k_x2, k_p = jax.random.split(key, 3)

    params = init_params(k_p)
    prepared = prepare_params(params)

    # Case 1: tiny batch (single ragged block, 16 < tile).
    x_small = jax.random.normal(k_x1, (16, INPUT_SIZE), jnp.float32)
    out_small = jax.block_until_ready(nn_clf_bert_forward(x_small, prepared))
    ref_small = reference_forward(x_small, params)
    assert out_small.shape == (16, OUTPUT_SIZE)
    assert jnp.allclose(out_small, ref_small, atol=2e-2, rtol=2e-2), \
        "mismatch vs JAX reference (small batch)"

    # Case 2: batch that exercises the multi-step grid + ragged last block.
    x_big = jax.random.normal(k_x2, (300, INPUT_SIZE), jnp.float32)
    out_big = jax.block_until_ready(nn_clf_bert_forward(x_big, prepared))
    ref_big = reference_forward(x_big, params)
    assert out_big.shape == (300, OUTPUT_SIZE)
    assert jnp.allclose(out_big, ref_big, atol=2e-2, rtol=2e-2), \
        "mismatch vs JAX reference (ragged multi-step batch)"

    print("KERNEL_OK")
</pallas_src>

<mosaic_0001>
module attributes {stable_mosaic.version = 11 : i64} {
  func.func @mlp_kernel(%arg0: i32, %arg1: memref<128x384xf32, #tpu.memory_space<vmem>>, %arg2: memref<384x128xbf16, #tpu.memory_space<vmem>>, %arg3: memref<1x128xf32, #tpu.memory_space<vmem>>, %arg4: memref<128x64xbf16, #tpu.memory_space<vmem>>, %arg5: memref<1x64xf32, #tpu.memory_space<vmem>>, %arg6: memref<64x30xbf16, #tpu.memory_space<vmem>>, %arg7: memref<1x30xf32, #tpu.memory_space<vmem>>, %arg8: memref<128x30xf32, #tpu.memory_space<vmem>>) attributes {dimension_semantics = [#tpu.dimension_semantics<parallel>], iteration_bounds = array<i64: 1>, scalar_prefetch = 0 : i64, scratch_operands = 0 : i64, tpu.core_type = #tpu.core_type<tc>, window_params = [{transform_indices = @transform_0, window_bounds = array<i64: 128, 384>}, {pipeline_mode = #tpu.pipeline_mode<synchronous>, transform_indices = @transform_1, window_bounds = array<i64: 384, 128>}, {pipeline_mode = #tpu.pipeline_mode<synchronous>, transform_indices = @transform_2, window_bounds = array<i64: 1, 128>}, {pipeline_mode = #tpu.pipeline_mode<synchronous>, transform_indices = @transform_3, window_bounds = array<i64: 128, 64>}, {pipeline_mode = #tpu.pipeline_mode<synchronous>, transform_indices = @transform_4, window_bounds = array<i64: 1, 64>}, {pipeline_mode = #tpu.pipeline_mode<synchronous>, transform_indices = @transform_5, window_bounds = array<i64: 64, 30>}, {pipeline_mode = #tpu.pipeline_mode<synchronous>, transform_indices = @transform_6, window_bounds = array<i64: 1, 30>}, {transform_indices = @transform_7, window_bounds = array<i64: 128, 30>}]} {
    %c0 = arith.constant 0 : index
    %c0_0 = arith.constant 0 : index
    %0 = vector.load %arg1[%c0, %c0_0] : memref<128x384xf32, #tpu.memory_space<vmem>>, vector<128x384xf32>
    %1 = arith.truncf %0 : vector<128x384xf32> to vector<128x384xbf16>
    %c0_1 = arith.constant 0 : index
    %c0_2 = arith.constant 0 : index
    %2 = vector.load %arg2[%c0_1, %c0_2] : memref<384x128xbf16, #tpu.memory_space<vmem>>, vector<384x128xbf16>
    %cst = arith.constant dense<0.000000e+00> : vector<128x128xf32>
    %3 = tpu.matmul %1, %2, %cst {dimension_numbers = #tpu.dot_dimension_numbers<[1], [0], [0], [1], [0, 0, 1, 1], [], []>} : vector<128x384xbf16>, vector<384x128xbf16>, vector<128x128xf32> -> vector<128x128xf32>
    %c0_3 = arith.constant 0 : index
    %c0_4 = arith.constant 0 : index
    %4 = vector.load %arg3[%c0_3, %c0_4] : memref<1x128xf32, #tpu.memory_space<vmem>>, vector<1x128xf32>
    %5 = vector.broadcast %4 : vector<1x128xf32> to vector<128x128xf32>
    %6 = arith.addf %3, %5 : vector<128x128xf32>
    %cst_5 = arith.constant 0.000000e+00 : f32
    %7 = vector.broadcast %cst_5 : f32 to vector<128x128xf32>
    %8 = arith.maximumf %6, %7 : vector<128x128xf32>
    %9 = arith.truncf %8 : vector<128x128xf32> to vector<128x128xbf16>
    %c0_6 = arith.constant 0 : index
    %c0_7 = arith.constant 0 : index
    %10 = vector.load %arg4[%c0_6, %c0_7] : memref<128x64xbf16, #tpu.memory_space<vmem>>, vector<128x64xbf16>
    %cst_8 = arith.constant dense<0.000000e+00> : vector<128x64xf32>
    %11 = tpu.matmul %9, %10, %cst_8 {dimension_numbers = #tpu.dot_dimension_numbers<[1], [0], [0], [1], [0, 0, 1, 1], [], []>} : vector<128x128xbf16>, vector<128x64xbf16>, vector<128x64xf32> -> vector<128x64xf32>
    %c0_9 = arith.constant 0 : index
    %c0_10 = arith.constant 0 : index
    %12 = vector.load %arg5[%c0_9, %c0_10] : memref<1x64xf32, #tpu.memory_space<vmem>>, vector<1x64xf32>
    %13 = vector.broadcast %12 : vector<1x64xf32> to vector<128x64xf32>
    %14 = arith.addf %11, %13 : vector<128x64xf32>
    %cst_11 = arith.constant 0.000000e+00 : f32
    %15 = vector.broadcast %cst_11 : f32 to vector<128x64xf32>
    %16 = arith.maximumf %14, %15 : vector<128x64xf32>
    %17 = arith.truncf %16 : vector<128x64xf32> to vector<128x64xbf16>
    %c0_12 = arith.constant 0 : index
    %c0_13 = arith.constant 0 : index
    %18 = vector.load %arg6[%c0_12, %c0_13] : memref<64x30xbf16, #tpu.memory_space<vmem>>, vector<64x30xbf16>
    %cst_14 = arith.constant dense<0.000000e+00> : vector<128x30xf32>
    %19 = tpu.matmul %17, %18, %cst_14 {dimension_numbers = #tpu.dot_dimension_numbers<[1], [0], [0], [1], [0, 0, 1, 1], [], []>} : vector<128x64xbf16>, vector<64x30xbf16>, vector<128x30xf32> -> vector<128x30xf32>
    %c0_15 = arith.constant 0 : index
    %c0_16 = arith.constant 0 : index
    %20 = vector.load %arg7[%c0_15, %c0_16] : memref<1x30xf32, #tpu.memory_space<vmem>>, vector<1x30xf32>
    %21 = vector.broadcast %20 : vector<1x30xf32> to vector<128x30xf32>
    %22 = arith.addf %19, %21 : vector<128x30xf32>
    %c0_17 = arith.constant 0 : index
    %c0_18 = arith.constant 0 : index
    %23 = vector.load %arg8[%c0_17, %c0_18] : memref<128x30xf32, #tpu.memory_space<vmem>>, vector<128x30xf32>
    tpu.vector_store %arg8[%c0_17, %c0_18], %22 {strides = array<i32>} : memref<128x30xf32, #tpu.memory_space<vmem>>, vector<128x30xf32>,
    return
  }
  func.func @transform_0(%arg0: i32) -> (i32, i32) {
    %c0_i32 = arith.constant 0 : i32
    %c0_i32_0 = arith.constant 0 : i32
    return %arg0, %c0_i32 : i32, i32
  }
  func.func @transform_1(%arg0: i32) -> (i32, i32) {
    %c0_i32 = arith.constant 0 : i32
    %c0_i32_0 = arith.constant 0 : i32
    %c0_i32_1 = arith.constant 0 : i32
    return %c0_i32, %c0_i32_0 : i32, i32
  }
  func.func @transform_2(%arg0: i32) -> (i32, i32) {
    %c0_i32 = arith.constant 0 : i32
    %c0_i32_0 = arith.constant 0 : i32
    %c0_i32_1 = arith.constant 0 : i32
    return %c0_i32, %c0_i32_0 : i32, i32
  }
  func.func @transform_3(%arg0: i32) -> (i32, i32) {
    %c0_i32 = arith.constant 0 : i32
    %c0_i32_0 = arith.constant 0 : i32
    %c0_i32_1 = arith.constant 0 : i32
    return %c0_i32, %c0_i32_0 : i32, i32
  }
  func.func @transform_4(%arg0: i32) -> (i32, i32) {
    %c0_i32 = arith.constant 0 : i32
    %c0_i32_0 = arith.constant 0 : i32
    %c0_i32_1 = arith.constant 0 : i32
    return %c0_i32, %c0_i32_0 : i32, i32
  }
  func.func @transform_5(%arg0: i32) -> (i32, i32) {
    %c0_i32 = arith.constant 0 : i32
    %c0_i32_0 = arith.constant 0 : i32
    %c0_i32_1 = arith.constant 0 : i32
    return %c0_i32, %c0_i32_0 : i32, i32
  }
  func.func @transform_6(%arg0: i32) -> (i32, i32) {
    %c0_i32 = arith.constant 0 : i32
    %c0_i32_0 = arith.constant 0 : i32
    %c0_i32_1 = arith.constant 0 : i32
    return %c0_i32, %c0_i32_0 : i32, i32
  }
  func.func @transform_7(%arg0: i32) -> (i32, i32) {
    %c0_i32 = arith.constant 0 : i32
    %c0_i32_0 = arith.constant 0 : i32
    return %arg0, %c0_i32 : i32, i32
  }
}

</mosaic_0001>

<llo_original>
// kernel: nn_clf_bert_forward.1
$region0: #{nn_clf_bert_forward.1}
  #allocation0 [shape = 'u32[]', space=smem, size = 0x4, offset = 0x4, fixed_abs, tag = 'smem constant byte address 0x4 - core index']
  #allocation1 [shape = 'u32[144,128]{1,0:T(1,128)}', space=vmem, size = 0x12000, scoped, tag = 'internal scratch']
  %s0 = inlined_call_operand.vmem [shape: f32[16,384], index: 0, kind: input, shape index: {}]
  %s1 = inlined_call_operand.hbm [shape: bf16[384,128], index: 1, kind: input, shape index: {}]
  %s2 = inlined_call_operand.vmem [shape: f32[1,128], index: 2, kind: input, shape index: {}]
  %s3 = inlined_call_operand.vmem [shape: bf16[128,64], index: 3, kind: input, shape index: {}]
  %s4 = inlined_call_operand.vmem [shape: f32[1,64], index: 4, kind: input, shape index: {}]
  %s5 = inlined_call_operand.vmem [shape: bf16[64,30], index: 5, kind: input, shape index: {}]
  %s6 = inlined_call_operand.vmem [shape: f32[1,30], index: 6, kind: input, shape index: {}]
  %s7 = inlined_call_operand.hbm [shape: f32[16,30], index: 7, kind: output, shape index: {}]
  %s8 = sld [smem:[#allocation0]]
  $region42: #{nn_clf_bert_forward.1} parent=0
    _
  %s10 = ssub.s32 1, %s8
  %s11 = scalar_select 0, %s10, %s8
  $region1: #{nn_clf_bert_forward.1} parent=0
    #allocation2 [shape = 'u8[98304]{0}', space=vmem, size = 0x18000, scoped, tag = 'input window, operand 1, single buffered']
    #allocation3 [shape = 's32[1]{0}', space=sflag, size = 0x4, scoped, tag = 'scoped memory for nn_clf_bert_forward.1']
    #allocation4 [shape = 's32[1]{0}', space=sflag, size = 0x4, scoped, tag = 'scoped memory for nn_clf_bert_forward.1']
    #allocation5 [shape = 'u8[65536]{0}', space=vmem, size = 0x10000, scoped, tag = 'output window, operand 0, single buffered']
    %12 = vsyncpa [#allocation3], 0
    %13 = vsyncpa [#allocation4], 0
    // Predicated region
    $region2: #{nn_clf_bert_forward.1} parent=1 // pred_check
      _
    $region3: #{nn_clf_bert_forward.1} parent=1 // pred_check_branch
      %15 = sbr.rel (0) target = $region5
    $region4: #{nn_clf_bert_forward.1} parent=1 // pred_region
      _
    $region5: #{nn_clf_bert_forward.1} parent=1 // pred_fallthru
      _
    // Predicated region
    $region6: #{nn_clf_bert_forward.1} parent=1 // pred_check
      _
    $region7: #{nn_clf_bert_forward.1} parent=1 // pred_check_branch
      %17 = sbr.rel (0) target = $region9
    $region8: #{nn_clf_bert_forward.1} parent=1 // pred_region
      %s19 = ssub.s32 3072, 3072
      %20 = vsyncadd [#allocation3], %s19
      %s21 = sshll.u32 [#allocation2], 4
      %s22 = int_to_ptr.vmem [resolvable:$true] %s21
      %27 = dma.hbm_to_vmem [thread:$0]  %s1, 3072, %s22, [#allocation3], 64, 64, 4
    $region9: #{nn_clf_bert_forward.1} parent=1 // pred_fallthru
      _
    // Predicated region
    $region10: #{nn_clf_bert_forward.1} parent=1 // pred_check
      _
    $region11: #{nn_clf_bert_forward.1} parent=1 // pred_check_branch
      %29 = sbr.rel (0) target = $region13
    $region12: #{nn_clf_bert_forward.1} parent=1 // pred_region
      _
    $region13: #{nn_clf_bert_forward.1} parent=1 // pred_fallthru
      _
    // Predicated region
    $region14: #{nn_clf_bert_forward.1} parent=1 // pred_check
      _
    $region15: #{nn_clf_bert_forward.1} parent=1 // pred_check_branch
      %31 = sbr.rel (0) target = $region17
    $region16: #{nn_clf_bert_forward.1} parent=1 // pred_region
      _
    $region17: #{nn_clf_bert_forward.1} parent=1 // pred_fallthru
      _
    // Predicated region
    $region18: #{nn_clf_bert_forward.1} parent=1 // pred_check
      _
    $region19: #{nn_clf_bert_forward.1} parent=1 // pred_check_branch
      %33 = sbr.rel (0) target = $region21
    $region20: #{nn_clf_bert_forward.1} parent=1 // pred_region
      _
    $region21: #{nn_clf_bert_forward.1} parent=1 // pred_fallthru
      _
    // Predicated region
    $region22: #{nn_clf_bert_forward.1} parent=1 // pred_check
      _
    $region23: #{nn_clf_bert_forward.1} parent=1 // pred_check_branch
      %35 = sbr.rel (0) target = $region25
    $region24: #{nn_clf_bert_forward.1} parent=1 // pred_region
      _
    $region25: #{nn_clf_bert_forward.1} parent=1 // pred_fallthru
      _
    // Predicated region
    $region26: #{nn_clf_bert_forward.1} parent=1 // pred_check
      _
    $region27: #{nn_clf_bert_forward.1} parent=1 // pred_check_branch
      %37 = sbr.rel (0) target = $region29
    $region28: #{nn_clf_bert_forward.1} parent=1 // pred_region
      _
    $region29: #{nn_clf_bert_forward.1} parent=1 // pred_fallthru
      _
    // Predicated region
    $region30: #{nn_clf_bert_forward.1} parent=1 // pred_check
      _
    $region31: #{nn_clf_bert_forward.1} parent=1 // pred_check_branch
      %39 = sbr.rel (0) target = $region33
    $region32: #{nn_clf_bert_forward.1} parent=1 // pred_region
      %40 = dma.done [#allocation3], 3072
    $region33: #{nn_clf_bert_forward.1} parent=1 // pred_fallthru
      _
    %v42 = vld [vmem:[%s0] sm:$0xff]
    %v43 = vld [vmem:[%s0 + $0x8] sm:$0xff]
    %v44 = vld [vmem:[%s0 + $0x10] sm:$0xff]
    %v45 = vld [vmem:[%s0 + $0x18] sm:$0xff]
    %v46 = vld [vmem:[%s0 + $0x20] sm:$0xff]
    %v47 = vld [vmem:[%s0 + $0x28] sm:$0xff]
    %v48 = vld [vmem:[%s0 + $0x30] sm:$0xff]
    %v49 = vld [vmem:[%s0 + $0x38] sm:$0xff]
    %v50 = vld [vmem:[%s0 + $0x40] sm:$0xff]
    %v51 = vld [vmem:[%s0 + $0x48] sm:$0xff]
    %v52 = vld [vmem:[%s0 + $0x50] sm:$0xff]
    %v53 = vld [vmem:[%s0 + $0x58] sm:$0xff]
    %v54 = vld [vmem:[%s0 + $0x60] sm:$0xff]
    %v55 = vld [vmem:[%s0 + $0x68] sm:$0xff]
    %v56 = vld [vmem:[%s0 + $0x70] sm:$0xff]
    %v57 = vld [vmem:[%s0 + $0x78] sm:$0xff]
    %v58 = vld [vmem:[%s0 + $0x80] sm:$0xff]
    %v59 = vld [vmem:[%s0 + $0x88] sm:$0xff]
    %v60 = vld [vmem:[%s0 + $0x90] sm:$0xff]
    %v61 = vld [vmem:[%s0 + $0x98] sm:$0xff]
    %v62 = vld [vmem:[%s0 + $0xa0] sm:$0xff]
    %v63 = vld [vmem:[%s0 + $0xa8] sm:$0xff]
    %v64 = vld [vmem:[%s0 + $0xb0] sm:$0xff]
    %v65 = vld [vmem:[%s0 + $0xb8] sm:$0xff]
    %v66 = vld [vmem:[%s0 + $0xc0] sm:$0xff]
    %v67 = vld [vmem:[%s0 + $0xc8] sm:$0xff]
    %v68 = vld [vmem:[%s0 + $0xd0] sm:$0xff]
    %v69 = vld [vmem:[%s0 + $0xd8] sm:$0xff]
    %v70 = vld [vmem:[%s0 + $0xe0] sm:$0xff]
    %v71 = vld [vmem:[%s0 + $0xe8] sm:$0xff]
    %v72 = vld [vmem:[%s0 + $0xf0] sm:$0xff]
    %v73 = vld [vmem:[%s0 + $0xf8] sm:$0xff]
    %v74 = vld [vmem:[%s0 + $0x100] sm:$0xff]
    %v75 = vld [vmem:[%s0 + $0x108] sm:$0xff]
    %v76 = vld [vmem:[%s0 + $0x110] sm:$0xff]
    %v77 = vld [vmem:[%s0 + $0x118] sm:$0xff]
    %v78 = vld [vmem:[%s0 + $0x120] sm:$0xff]
    %v79 = vld [vmem:[%s0 + $0x128] sm:$0xff]
    %v80 = vld [vmem:[%s0 + $0x130] sm:$0xff]
    %v81 = vld [vmem:[%s0 + $0x138] sm:$0xff]
    %v82 = vld [vmem:[%s0 + $0x140] sm:$0xff]
    %v83 = vld [vmem:[%s0 + $0x148] sm:$0xff]
    %v84 = vld [vmem:[%s0 + $0x150] sm:$0xff]
    %v85 = vld [vmem:[%s0 + $0x158] sm:$0xff]
    %v86 = vld [vmem:[%s0 + $0x160] sm:$0xff]
    %v87 = vld [vmem:[%s0 + $0x168] sm:$0xff]
    %v88 = vld [vmem:[%s0 + $0x170] sm:$0xff]
    %v89 = vld [vmem:[%s0 + $0x178] sm:$0xff]
    %v90 = vpack.c.bf16 %v45, %v42
    %v91 = vpack.c.bf16 %v46, %v43
    %v92 = vpack.c.bf16 %v47, %v44
    %v93 = vpack.c.bf16 %v51, %v48
    %v94 = vpack.c.bf16 %v52, %v49
    %v95 = vpack.c.bf16 %v53, %v50
    %v96 = vpack.c.bf16 %v57, %v54
    %v97 = vpack.c.bf16 %v58, %v55
    %v98 = vpack.c.bf16 %v59, %v56
    %v99 = vpack.c.bf16 %v63, %v60
    %v100 = vpack.c.bf16 %v64, %v61
    %v101 = vpack.c.bf16 %v65, %v62
    %v102 = vpack.c.bf16 %v69, %v66
    %v103 = vpack.c.bf16 %v70, %v67
    %v104 = vpack.c.bf16 %v71, %v68
    %v105 = vpack.c.bf16 %v75, %v72
    %v106 = vpack.c.bf16 %v76, %v73
    %v107 = vpack.c.bf16 %v77, %v74
    %v108 = vpack.c.bf16 %v81, %v78
    %v109 = vpack.c.bf16 %v82, %v79
    %v110 = vpack.c.bf16 %v83, %v80
    %v111 = vpack.c.bf16 %v87, %v84
    %v112 = vpack.c.bf16 %v88, %v85
    %v113 = vpack.c.bf16 %v89, %v86
    %v114 = vld [vmem:[#allocation2] sm:$0xf]
    %v115 = vld [vmem:[#allocation2 + $0x4] sm:$0xf]
    %v116 = vld [vmem:[#allocation2 + $0x8] sm:$0xf]
    %v117 = vld [vmem:[#allocation2 + $0xc] sm:$0xf]
    %v118 = vld [vmem:[#allocation2 + $0x10] sm:$0xf]
    %v119 = vld [vmem:[#allocation2 + $0x14] sm:$0xf]
    %v120 = vld [vmem:[#allocation2 + $0x18] sm:$0xf]
    %v121 = vld [vmem:[#allocation2 + $0x1c] sm:$0xf]
    %v122 = vld [vmem:[#allocation2 + $0x20] sm:$0xf]
    %v123 = vld [vmem:[#allocation2 + $0x24] sm:$0xf]
    %v124 = vld [vmem:[#allocation2 + $0x28] sm:$0xf]
    %v125 = vld [vmem:[#allocation2 + $0x2c] sm:$0xf]
    %v126 = vld [vmem:[#allocation2 + $0x30] sm:$0xf]
    %v127 = vld [vmem:[#allocation2 + $0x34] sm:$0xf]
    %v128 = vld [vmem:[#allocation2 + $0x38] sm:$0xf]
    %v129 = vld [vmem:[#allocation2 + $0x3c] sm:$0xf]
    %v130 = vld [vmem:[#allocation2 + $0x40] sm:$0xf]
    %v131 = vld [vmem:[#allocation2 + $0x44] sm:$0xf]
    %v132 = vld [vmem:[#allocation2 + $0x48] sm:$0xf]
    %v133 = vld [vmem:[#allocation2 + $0x4c] sm:$0xf]
    %v134 = vld [vmem:[#allocation2 + $0x50] sm:$0xf]
    %v135 = vld [vmem:[#allocation2 + $0x54] sm:$0xf]
    %v136 = vld [vmem:[#allocation2 + $0x58] sm:$0xf]
    %v137 = vld [vmem:[#allocation2 + $0x5c] sm:$0xf]
    %v138 = vld [vmem:[#allocation2 + $0x60] sm:$0xf]
    %v139 = vld [vmem:[#allocation2 + $0x64] sm:$0xf]
    %v140 = vld [vmem:[#allocation2 + $0x68] sm:$0xf]
    %v141 = vld [vmem:[#allocation2 + $0x6c] sm:$0xf]
    %v142 = vld [vmem:[#allocation2 + $0x70] sm:$0xf]
    %v143 = vld [vmem:[#allocation2 + $0x74] sm:$0xf]
    %v144 = vld [vmem:[#allocation2 + $0x78] sm:$0xf]
    %v145 = vld [vmem:[#allocation2 + $0x7c] sm:$0xf]
    %v146 = vld [vmem:[#allocation2 + $0x80] sm:$0xf]
    %v147 = vld [vmem:[#allocation2 + $0x84] sm:$0xf]
    %v148 = vld [vmem:[#allocation2 + $0x88] sm:$0xf]
    %v149 = vld [vmem:[#allocation2 + $0x8c] sm:$0xf]
    %v150 = vld [vmem:[#allocation2 + $0x90] sm:$0xf]
    %v151 = vld [vmem:[#allocation2 + $0x94] sm:$0xf]
    %v152 = vld [vmem:[#allocation2 + $0x98] sm:$0xf]
    %v153 = vld [vmem:[#allocation2 + $0x9c] sm:$0xf]
    %v154 = vld [vmem:[#allocation2 + $0xa0] sm:$0xf]
    %v155 = vld [vmem:[#allocation2 + $0xa4] sm:$0xf]
    %v156 = vld [vmem:[#allocation2 + $0xa8] sm:$0xf]
    %v157 = vld [vmem:[#allocation2 + $0xac] sm:$0xf]
    %v158 = vld [vmem:[#allocation2 + $0xb0] sm:$0xf]
    %v159 = vld [vmem:[#allocation2 + $0xb4] sm:$0xf]
    %v160 = vld [vmem:[#allocation2 + $0xb8] sm:$0xf]
    %v161 = vld [vmem:[#allocation2 + $0xbc] sm:$0xf]
    %v162 = vld [vmem:[%s2] sm:$0x1]
    %v164 = vlaneseq
    %v165 = vshrl.u32 %v164, 7
    %v166 = vsub.s32 0, %v165
    %v167 = vrot.slane %v162, %v166
    %v217 = vunpack.c.l.b16 %v114
    %v218 = vunpack.c.l.b16 %v115
    %v219 = vunpack.c.l.b16 %v116
    %v220 = vunpack.c.l.b16 %v117
    %v221 = vunpack.c.l.b16 %v118
    %v222 = vunpack.c.l.b16 %v119
    %v223 = vunpack.c.l.b16 %v120
    %v224 = vunpack.c.l.b16 %v121
    %v225 = vunpack.c.l.b16 %v122
    %v226 = vunpack.c.l.b16 %v123
    %v227 = vunpack.c.l.b16 %v124
    %v228 = vunpack.c.l.b16 %v125
    %v229 = vunpack.c.l.b16 %v126
    %v230 = vunpack.c.l.b16 %v127
    %v231 = vunpack.c.l.b16 %v128
    %v232 = vunpack.c.l.b16 %v129
    %v233 = vunpack.c.l.b16 %v130
    %v234 = vunpack.c.l.b16 %v131
    %v235 = vunpack.c.l.b16 %v132
    %v236 = vunpack.c.l.b16 %v133
    %v237 = vunpack.c.l.b16 %v134
    %v238 = vunpack.c.l.b16 %v135
    %v239 = vunpack.c.l.b16 %v136
    %v240 = vunpack.c.l.b16 %v137
    %v241 = vunpack.c.l.b16 %v138
    %v242 = vunpack.c.l.b16 %v139
    %v243 = vunpack.c.l.b16 %v140
    %v244 = vunpack.c.l.b16 %v141
    %v245 = vunpack.c.l.b16 %v142
    %v246 = vunpack.c.l.b16 %v143
    %v247 = vunpack.c.l.b16 %v144
    %v248 = vunpack.c.l.b16 %v145
    %v249 = vunpack.c.l.b16 %v146
    %v250 = vunpack.c.l.b16 %v147
    %v251 = vunpack.c.l.b16 %v148
    %v252 = vunpack.c.l.b16 %v149
    %v253 = vunpack.c.l.b16 %v150
    %v254 = vunpack.c.l.b16 %v151
    %v255 = vunpack.c.l.b16 %v152
    %v256 = vunpack.c.l.b16 %v153
    %v257 = vunpack.c.l.b16 %v154
    %v258 = vunpack.c.l.b16 %v155
    %v259 = vunpack.c.l.b16 %v156
    %v260 = vunpack.c.l.b16 %v157
    %v261 = vunpack.c.l.b16 %v158
    %v262 = vunpack.c.l.b16 %v159
    %v263 = vunpack.c.l.b16 %v160
    %v264 = vunpack.c.l.b16 %v161
    %v265 = vpack.c.b16 %v218, %v217
    %v266 = vpack.c.b16 %v220, %v219
    %v267 = vpack.c.b16 %v222, %v221
    %v268 = vpack.c.b16 %v224, %v223
    %v269 = vpack.c.b16 %v226, %v225
    %v270 = vpack.c.b16 %v228, %v227
    %v271 = vpack.c.b16 %v230, %v229
    %v272 = vpack.c.b16 %v232, %v231
    %v273 = vpack.c.b16 %v234, %v233
    %v274 = vpack.c.b16 %v236, %v235
    %v275 = vpack.c.b16 %v238, %v237
    %v276 = vpack.c.b16 %v240, %v239
    %v277 = vpack.c.b16 %v242, %v241
    %v278 = vpack.c.b16 %v244, %v243
    %v279 = vpack.c.b16 %v246, %v245
    %v280 = vpack.c.b16 %v248, %v247
    %v281 = vpack.c.b16 %v250, %v249
    %v282 = vpack.c.b16 %v252, %v251
    %v283 = vpack.c.b16 %v254, %v253
    %v284 = vpack.c.b16 %v256, %v255
    %v285 = vpack.c.b16 %v258, %v257
    %v286 = vpack.c.b16 %v260, %v259
    %v287 = vpack.c.b16 %v262, %v261
    %v288 = vpack.c.b16 %v264, %v263
    %313 = vmatprep.subr.bf16.mxu0 0
    %314 = vmatpush1.bf16.msra.mxu0 %v265
    %315 = vmatprep.subr.bf16.mxu0 0
    %316 = vmatpush1.bf16.msra.mxu0 %v266
    %317 = vmatprep.subr.bf16.mxu0 0
    %318 = vmatpush1.bf16.msra.mxu0 %v267
    %319 = vmatprep.subr.bf16.mxu0 0
    %320 = vmatpush1.bf16.msra.mxu0 %v268
    %321 = vmatprep.subr.bf16.mxu0 0
    %322 = vmatpush1.bf16.msra.mxu0 %v269
    %323 = vmatprep.subr.bf16.mxu0 0
    %324 = vmatpush1.bf16.msra.mxu0 %v270
    %325 = vmatprep.subr.bf16.mxu0 0
    %326 = vmatpush1.bf16.msra.mxu0 %v271
    %327 = vmatprep.subr.bf16.mxu0 0
    %328 = vmatpush1.bf16.msra.mxu0 %v272
    %329 = vmatprep.subr.bf16.mxu0 0
    %330 = vmatpush1.bf16.msra.mxu0 %v273
    %331 = vmatprep.subr.bf16.mxu0 0
    %332 = vmatpush1.bf16.msra.mxu0 %v274
    %333 = vmatprep.subr.bf16.mxu0 0
    %334 = vmatpush1.bf16.msra.mxu0 %v275
    %335 = vmatprep.subr.bf16.mxu0 0
    %336 = vmatpush1.bf16.msra.mxu0 %v276
    %337 = vmatprep.subr.bf16.mxu0 0
    %338 = vmatpush1.bf16.msra.mxu0 %v277
    %339 = vmatprep.subr.bf16.mxu0 0
    %340 = vmatpush1.bf16.msra.mxu0 %v278
    %341 = vmatprep.subr.bf16.mxu0 0
    %342 = vmatpush1.bf16.msra.mxu0 %v279
    %343 = vmatprep.subr.bf16.mxu0 0
    %344 = vmatpush1.bf16.msra.mxu0 %v280
    %345 = vmatprep.mubr.bf16.mxu0 %v91
    %346 = vmatmul.mubr.bf16.gmra.mrb[0].mxu0 %v90
    %v347 = vpop.f32.mrb[0].mxu0
    %v348 = vadd.f32 %v167, %v347
    %v349 = vpop.f32.mrb[0].mxu0
    %v350 = vpop.f32.mrb[0].mxu0
    %v351 = vadd.f32 %v167, %v350
    %v352 = vpop.f32.mrb[0].mxu0
    %353 = vmatprep.mubr.bf16.mxu0 %v94
    %354 = vmatmul.mubr.bf16.gmra.mrb[0].mxu0 %v93
    %v355 = vpop.f32.mrb[0].mxu0
    %v356 = vadd.f32 %v167, %v355
    %v357 = vpop.f32.mrb[0].mxu0
    %v358 = vpop.f32.mrb[0].mxu0
    %v359 = vadd.f32 %v167, %v358
    %v360 = vpop.f32.mrb[0].mxu0
    %361 = vmatprep.mubr.bf16.mxu0 %v97
    %362 = vmatmul.mubr.bf16.gmra.mrb[0].mxu0 %v96
    %v363 = vpop.f32.mrb[0].mxu0
    %v364 = vadd.f32 %v167, %v363
    %v365 = vpop.f32.mrb[0].mxu0
    %v366 = vpop.f32.mrb[0].mxu0
    %v367 = vadd.f32 %v167, %v366
    %v368 = vpop.f32.mrb[0].mxu0
    %369 = vmatprep.mubr.bf16.mxu0 %v100
    %370 = vmatmul.mubr.bf16.gmra.mrb[0].mxu0 %v99
    %v371 = vpop.f32.mrb[0].mxu0
    %v372 = vadd.f32 %v167, %v371
    %v373 = vpop.f32.mrb[0].mxu0
    %v374 = vpop.f32.mrb[0].mxu0
    %v375 = vadd.f32 %v167, %v374
    %v376 = vpop.f32.mrb[0].mxu0
    %377 = vmatprep.mubr.bf16.mxu0 %v103
    %378 = vmatmul.mubr.bf16.gmra.mrb[0].mxu0 %v102
    %v379 = vpop.f32.mrb[0].mxu0
    %v380 = vadd.f32 %v167, %v379
    %v381 = vpop.f32.mrb[0].mxu0
    %v382 = vpop.f32.mrb[0].mxu0
    %v383 = vadd.f32 %v167, %v382
    %v384 = vpop.f32.mrb[0].mxu0
    %385 = vmatprep.mubr.bf16.mxu0 %v106
    %386 = vmatmul.mubr.bf16.gmra.mrb[0].mxu0 %v105
    %v387 = vpop.f32.mrb[0].mxu0
    %v388 = vadd.f32 %v167, %v387
    %v389 = vpop.f32.mrb[0].mxu0
    %v390 = vpop.f32.mrb[0].mxu0
    %v391 = vadd.f32 %v167, %v390
    %v392 = vpop.f32.mrb[0].mxu0
    %393 = vmatprep.mubr.bf16.mxu0 %v109
    %394 = vmatmul.mubr.bf16.gmra.mrb[0].mxu0 %v108
    %v395 = vpop.f32.mrb[0].mxu0
    %v396 = vadd.f32 %v167, %v395
    %v397 = vpop.f32.mrb[0].mxu0
    %v398 = vpop.f32.mrb[0].mxu0
    %v399 = vadd.f32 %v167, %v398
    %v400 = vpop.f32.mrb[0].mxu0
    %401 = vmatprep.mubr.bf16.mxu0 %v112
    %402 = vmatmul.mubr.bf16.gmra.mrb[0].mxu0 %v111
    %v403 = vpop.f32.mrb[0].mxu0
    %v404 = vadd.f32 %v167, %v403
    %v405 = vpop.f32.mrb[0].mxu0
    %v406 = vpop.f32.mrb[0].mxu0
    %v407 = vadd.f32 %v167, %v406
    %v408 = vpop.f32.mrb[0].mxu0
    %409 = vdwg.mxu0
    %410 = vmatprep.subr.bf16.mxu0 0
    %411 = vmatpush1.bf16.msra.mxu0 %v281
    %412 = vmatprep.subr.bf16.mxu0 0
    %413 = vmatpush1.bf16.msra.mxu0 %v282
    %414 = vmatprep.subr.bf16.mxu0 0
    %415 = vmatpush1.bf16.msra.mxu0 %v283
    %416 = vmatprep.subr.bf16.mxu0 0
    %417 = vmatpush1.bf16.msra.mxu0 %v284
    %418 = vmatprep.subr.bf16.mxu0 0
    %419 = vmatpush1.bf16.msra.mxu0 %v285
    %420 = vmatprep.subr.bf16.mxu0 0
    %421 = vmatpush1.bf16.msra.mxu0 %v286
    %422 = vmatprep.subr.bf16.mxu0 0
    %423 = vmatpush1.bf16.msra.mxu0 %v287
    %424 = vmatprep.subr.bf16.mxu0 0
    %425 = vmatpush1.bf16.msra.mxu0 %v288
    %426 = vmatprep.subr.bf16.mxu0 0
    %427 = vmatpush1.bf16.msra.mxu0 0
    %428 = vmatprep.subr.bf16.mxu0 0
    %429 = vmatpush1.bf16.msra.mxu0 0
    %430 = vmatprep.subr.bf16.mxu0 0
    %431 = vmatpush1.bf16.msra.mxu0 0
    %432 = vmatprep.subr.bf16.mxu0 0
    %433 = vmatpush1.bf16.msra.mxu0 0
    %434 = vmatprep.subr.bf16.mxu0 0
    %435 = vmatpush1.bf16.msra.mxu0 0
    %436 = vmatprep.subr.bf16.mxu0 0
    %437 = vmatpush1.bf16.msra.mxu0 0
    %438 = vmatprep.subr.bf16.mxu0 0
    %439 = vmatpush1.bf16.msra.mxu0 0
    %440 = vmatprep.subr.bf16.mxu0 0
    %441 = vmatpush1.bf16.msra.mxu0 0
    %442 = vmatprep.mubr.bf16.mxu0 0
    %443 = vmatmul.mubr.bf16.gmra.mrb[0].mxu0 %v92
    %v444 = vpop.f32.mrb[0].mxu0
    %v445 = vadd.f32 %v348, %v444
    %v446 = vpop.f32.mrb[0].mxu0
    %v447 = vpop.f32.mrb[0].mxu0
    %v448 = vadd.f32 %v351, %v447
    %v449 = vpop.f32.mrb[0].mxu0
    %450 = vmatprep.mubr.bf16.mxu0 0
    %451 = vmatmul.mubr.bf16.gmra.mrb[0].mxu0 %v95
    %v452 = vpop.f32.mrb[0].mxu0
    %v453 = vadd.f32 %v356, %v452
    %v454 = vpop.f32.mrb[0].mxu0
    %v455 = vpop.f32.mrb[0].mxu0
    %v456 = vadd.f32 %v359, %v455
    %v457 = vpop.f32.mrb[0].mxu0
    %458 = vmatprep.mubr.bf16.mxu0 0
    %459 = vmatmul.mubr.bf16.gmra.mrb[0].mxu0 %v98
    %v460 = vpop.f32.mrb[0].mxu0
    %v461 = vadd.f32 %v364, %v460
    %v462 = vpop.f32.mrb[0].mxu0
    %v463 = vpop.f32.mrb[0].mxu0
    %v464 = vadd.f32 %v367, %v463
    %v465 = vpop.f32.mrb[0].mxu0
    %466 = vmatprep.mubr.bf16.mxu0 0
    %467 = vmatmul.mubr.bf16.gmra.mrb[0].mxu0 %v101
    %v468 = vpop.f32.mrb[0].mxu0
    %v469 = vadd.f32 %v372, %v468
    %v470 = vpop.f32.mrb[0].mxu0
    %v471 = vpop.f32.mrb[0].mxu0
    %v472 = vadd.f32 %v375, %v471
    %v473 = vpop.f32.mrb[0].mxu0
    %474 = vmatprep.mubr.bf16.mxu0 0
    %475 = vmatmul.mubr.bf16.gmra.mrb[0].mxu0 %v104
    %v476 = vpop.f32.mrb[0].mxu0
    %v477 = vadd.f32 %v380, %v476
    %v478 = vpop.f32.mrb[0].mxu0
    %v479 = vpop.f32.mrb[0].mxu0
    %v480 = vadd.f32 %v383, %v479
    %v481 = vpop.f32.mrb[0].mxu0
    %482 = vmatprep.mubr.bf16.mxu0 0
    %483 = vmatmul.mubr.bf16.gmra.mrb[0].mxu0 %v107
    %v484 = vpop.f32.mrb[0].mxu0
    %v485 = vadd.f32 %v388, %v484
    %v486 = vpop.f32.mrb[0].mxu0
    %v487 = vpop.f32.mrb[0].mxu0
    %v488 = vadd.f32 %v391, %v487
    %v489 = vpop.f32.mrb[0].mxu0
    %490 = vmatprep.mubr.bf16.mxu0 0
    %491 = vmatmul.mubr.bf16.gmra.mrb[0].mxu0 %v110
    %v492 = vpop.f32.mrb[0].mxu0
    %v493 = vadd.f32 %v396, %v492
    %v494 = vpop.f32.mrb[0].mxu0
    %v495 = vpop.f32.mrb[0].mxu0
    %v496 = vadd.f32 %v399, %v495
    %v497 = vpop.f32.mrb[0].mxu0
    %498 = vmatprep.mubr.bf16.mxu0 0
    %499 = vmatmul.mubr.bf16.gmra.mrb[0].mxu0 %v113
    %v500 = vpop.f32.mrb[0].mxu0
    %v501 = vadd.f32 %v404, %v500
    %v502 = vpop.f32.mrb[0].mxu0
    %v503 = vpop.f32.mrb[0].mxu0
    %v504 = vadd.f32 %v407, %v503
    %v505 = vpop.f32.mrb[0].mxu0
    %506 = vdwg.mxu0
    %v507 = vmax.f32 %v445, 0.0
    %v508 = vmax.f32 %v448, 0.0
    %v509 = vmax.f32 %v453, 0.0
    %v510 = vmax.f32 %v456, 0.0
    %v511 = vmax.f32 %v461, 0.0
    %v512 = vmax.f32 %v464, 0.0
    %v513 = vmax.f32 %v469, 0.0
    %v514 = vmax.f32 %v472, 0.0
    %v515 = vmax.f32 %v477, 0.0
    %v516 = vmax.f32 %v480, 0.0
    %v517 = vmax.f32 %v485, 0.0
    %v518 = vmax.f32 %v488, 0.0
    %v519 = vmax.f32 %v493, 0.0
    %v520 = vmax.f32 %v496, 0.0
    %v521 = vmax.f32 %v501, 0.0
    %v522 = vmax.f32 %v504, 0.0
    %v523 = vpack.c.bf16 %v508, %v507
    %v524 = vpack.c.bf16 %v510, %v509
    %v525 = vpack.c.bf16 %v512, %v511
    %v526 = vpack.c.bf16 %v514, %v513
    %v527 = vpack.c.bf16 %v516, %v515
    %v528 = vpack.c.bf16 %v518, %v517
    %v529 = vpack.c.bf16 %v520, %v519
    %v530 = vpack.c.bf16 %v522, %v521
    %v531 = vld [vmem:[%s3] sm:$0xf]
    %v532 = vld [vmem:[%s3 + $0x4] sm:$0xf]
    %v533 = vld [vmem:[%s3 + $0x8] sm:$0xf]
    %v534 = vld [vmem:[%s3 + $0xc] sm:$0xf]
    %v535 = vld [vmem:[%s3 + $0x10] sm:$0xf]
    %v536 = vld [vmem:[%s3 + $0x14] sm:$0xf]
    %v537 = vld [vmem:[%s3 + $0x18] sm:$0xf]
    %v538 = vld [vmem:[%s3 + $0x1c] sm:$0xf]
    %v539 = vld [vmem:[%s3 + $0x20] sm:$0xf]
    %v540 = vld [vmem:[%s3 + $0x24] sm:$0xf]
    %v541 = vld [vmem:[%s3 + $0x28] sm:$0xf]
    %v542 = vld [vmem:[%s3 + $0x2c] sm:$0xf]
    %v543 = vld [vmem:[%s3 + $0x30] sm:$0xf]
    %v544 = vld [vmem:[%s3 + $0x34] sm:$0xf]
    %v545 = vld [vmem:[%s3 + $0x38] sm:$0xf]
    %v546 = vld [vmem:[%s3 + $0x3c] sm:$0xf]
    %v547 = vld [vmem:[%s4] sm:$0x1]
    %v549 = vlaneseq
    %v550 = vshrl.u32 %v549, 7
    %v551 = vsub.s32 0, %v550
    %v552 = vrot.slane %v547, %v551
    %v570 = vunpack.c.l.b16 %v531
    %v571 = vunpack.c.l.b16 %v532
    %v572 = vunpack.c.l.b16 %v533
    %v573 = vunpack.c.l.b16 %v534
    %v574 = vunpack.c.l.b16 %v535
    %v575 = vunpack.c.l.b16 %v536
    %v576 = vunpack.c.l.b16 %v537
    %v577 = vunpack.c.l.b16 %v538
    %v578 = vunpack.c.l.b16 %v539
    %v579 = vunpack.c.l.b16 %v540
    %v580 = vunpack.c.l.b16 %v541
    %v581 = vunpack.c.l.b16 %v542
    %v582 = vunpack.c.l.b16 %v543
    %v583 = vunpack.c.l.b16 %v544
    %v584 = vunpack.c.l.b16 %v545
    %v585 = vunpack.c.l.b16 %v546
    %v586 = vpack.c.b16 %v571, %v570
    %v587 = vpack.c.b16 %v573, %v572
    %v588 = vpack.c.b16 %v575, %v574
    %v589 = vpack.c.b16 %v577, %v576
    %v590 = vpack.c.b16 %v579, %v578
    %v591 = vpack.c.b16 %v581, %v580
    %v592 = vpack.c.b16 %v583, %v582
    %v593 = vpack.c.b16 %v585, %v584
    %602 = vmatprep.subr.bf16.mxu0 0
    %603 = vmatpush1.bf16.msra.mxu0 %v586
    %604 = vmatprep.subr.bf16.mxu0 0
    %605 = vmatpush1.bf16.msra.mxu0 %v587
    %606 = vmatprep.subr.bf16.mxu0 0
    %607 = vmatpush1.bf16.msra.mxu0 %v588
    %608 = vmatprep.subr.bf16.mxu0 0
    %609 = vmatpush1.bf16.msra.mxu0 %v589
    %610 = vmatprep.subr.bf16.mxu0 0
    %611 = vmatpush1.bf16.msra.mxu0 %v590
    %612 = vmatprep.subr.bf16.mxu0 0
    %613 = vmatpush1.bf16.msra.mxu0 %v591
    %614 = vmatprep.subr.bf16.mxu0 0
    %615 = vmatpush1.bf16.msra.mxu0 %v592
    %616 = vmatprep.subr.bf16.mxu0 0
    %617 = vmatpush1.bf16.msra.mxu0 %v593
    %618 = vmatprep.subr.bf16.mxu0 0
    %619 = vmatpush1.bf16.msra.mxu0 0
    %620 = vmatprep.subr.bf16.mxu0 0
    %621 = vmatpush1.bf16.msra.mxu0 0
    %622 = vmatprep.subr.bf16.mxu0 0
    %623 = vmatpush1.bf16.msra.mxu0 0
    %624 = vmatprep.subr.bf16.mxu0 0
    %625 = vmatpush1.bf16.msra.mxu0 0
    %626 = vmatprep.subr.bf16.mxu0 0
    %627 = vmatpush1.bf16.msra.mxu0 0
    %628 = vmatprep.subr.bf16.mxu0 0
    %629 = vmatpush1.bf16.msra.mxu0 0
    %630 = vmatprep.subr.bf16.mxu0 0
    %631 = vmatpush1.bf16.msra.mxu0 0
    %632 = vmatprep.subr.bf16.mxu0 0
    %633 = vmatpush1.bf16.msra.mxu0 0
    %634 = vmatprep.mubr.bf16.mxu0 0
    %635 = vmatmul.mubr.bf16.gmra.mrb[0].mxu0 %v523
    %v636 = vpop.f32.mrb[0].mxu0
    %v637 = vadd.f32 %v552, %v636
    %v638 = vpop.f32.mrb[0].mxu0
    %v639 = vpop.f32.mrb[0].mxu0
    %v640 = vadd.f32 %v552, %v639
    %v641 = vpop.f32.mrb[0].mxu0
    %642 = vmatprep.mubr.bf16.mxu0 0
    %643 = vmatmul.mubr.bf16.gmra.mrb[0].mxu0 %v524
    %v644 = vpop.f32.mrb[0].mxu0
    %v645 = vadd.f32 %v552, %v644
    %v646 = vpop.f32.mrb[0].mxu0
    %v647 = vpop.f32.mrb[0].mxu0
    %v648 = vadd.f32 %v552, %v647
    %v649 = vpop.f32.mrb[0].mxu0
    %650 = vmatprep.mubr.bf16.mxu0 0
    %651 = vmatmul.mubr.bf16.gmra.mrb[0].mxu0 %v525
    %v652 = vpop.f32.mrb[0].mxu0
    %v653 = vadd.f32 %v552, %v652
    %v654 = vpop.f32.mrb[0].mxu0
    %v655 = vpop.f32.mrb[0].mxu0
    %v656 = vadd.f32 %v552, %v655
    %v657 = vpop.f32.mrb[0].mxu0
    %658 = vmatprep.mubr.bf16.mxu0 0
    %659 = vmatmul.mubr.bf16.gmra.mrb[0].mxu0 %v526
    %v660 = vpop.f32.mrb[0].mxu0
    %v661 = vadd.f32 %v552, %v660
    %v662 = vpop.f32.mrb[0].mxu0
    %v663 = vpop.f32.mrb[0].mxu0
    %v664 = vadd.f32 %v552, %v663
    %v665 = vpop.f32.mrb[0].mxu0
    %666 = vmatprep.mubr.bf16.mxu0 0
    %667 = vmatmul.mubr.bf16.gmra.mrb[0].mxu0 %v527
    %v668 = vpop.f32.mrb[0].mxu0
    %v669 = vadd.f32 %v552, %v668
    %v670 = vpop.f32.mrb[0].mxu0
    %v671 = vpop.f32.mrb[0].mxu0
    %v672 = vadd.f32 %v552, %v671
    %v673 = vpop.f32.mrb[0].mxu0
    %674 = vmatprep.mubr.bf16.mxu0 0
    %675 = vmatmul.mubr.bf16.gmra.mrb[0].mxu0 %v528
    %v676 = vpop.f32.mrb[0].mxu0
    %v677 = vadd.f32 %v552, %v676
    %v678 = vpop.f32.mrb[0].mxu0
    %v679 = vpop.f32.mrb[0].mxu0
    %v680 = vadd.f32 %v552, %v679
    %v681 = vpop.f32.mrb[0].mxu0
    %682 = vmatprep.mubr.bf16.mxu0 0
    %683 = vmatmul.mubr.bf16.gmra.mrb[0].mxu0 %v529
    %v684 = vpop.f32.mrb[0].mxu0
    %v685 = vadd.f32 %v552, %v684
    %v686 = vpop.f32.mrb[0].mxu0
    %v687 = vpop.f32.mrb[0].mxu0
    %v688 = vadd.f32 %v552, %v687
    %v689 = vpop.f32.mrb[0].mxu0
    %690 = vmatprep.mubr.bf16.mxu0 0
    %691 = vmatmul.mubr.bf16.gmra.mrb[0].mxu0 %v530
    %v692 = vpop.f32.mrb[0].mxu0
    %v693 = vadd.f32 %v552, %v692
    %v694 = vpop.f32.mrb[0].mxu0
    %v695 = vpop.f32.mrb[0].mxu0
    %v696 = vadd.f32 %v552, %v695
    %v697 = vpop.f32.mrb[0].mxu0
    %698 = vdwg.mxu0
    %v699 = vmax.f32 %v637, 0.0
    %v700 = vmax.f32 %v640, 0.0
    %v701 = vmax.f32 %v645, 0.0
    %v702 = vmax.f32 %v648, 0.0
    %v703 = vmax.f32 %v653, 0.0
    %v704 = vmax.f32 %v656, 0.0
    %v705 = vmax.f32 %v661, 0.0
    %v706 = vmax.f32 %v664, 0.0
    %v707 = vmax.f32 %v669, 0.0
    %v708 = vmax.f32 %v672, 0.0
    %v709 = vmax.f32 %v677, 0.0
    %v710 = vmax.f32 %v680, 0.0
    %v711 = vmax.f32 %v685, 0.0
    %v712 = vmax.f32 %v688, 0.0
    %v713 = vmax.f32 %v693, 0.0
    %v714 = vmax.f32 %v696, 0.0
    %v715 = vpack.c.bf16 %v700, %v699
    %v716 = vpack.c.bf16 %v702, %v701
    %v717 = vpack.c.bf16 %v704, %v703
    %v718 = vpack.c.bf16 %v706, %v705
    %v719 = vpack.c.bf16 %v708, %v707
    %v720 = vpack.c.bf16 %v710, %v709
    %v721 = vpack.c.bf16 %v712, %v711
    %v722 = vpack.c.bf16 %v714, %v713
    %v723 = vld [vmem:[%s5] sm:$0xf]
    %v724 = vld [vmem:[%s5 + $0x4] sm:$0xf]
    %v725 = vld [vmem:[%s5 + $0x8] sm:$0xf]
    %v726 = vld [vmem:[%s5 + $0xc] sm:$0xf]
    %v727 = vld [vmem:[%s5 + $0x10] sm:$0xf]
    %v728 = vld [vmem:[%s5 + $0x14] sm:$0xf]
    %v729 = vld [vmem:[%s5 + $0x18] sm:$0xf]
    %v730 = vld [vmem:[%s5 + $0x1c] sm:$0xf]
    %v731 = vld [vmem:[%s6] sm:$0x1]
    %v733 = vlaneseq
    %v734 = vshrl.u32 %v733, 7
    %v735 = vsub.s32 0, %v734
    %v736 = vrot.slane %v731, %v735
    %v746 = vunpack.c.l.b16 %v723
    %v747 = vunpack.c.l.b16 %v724
    %v748 = vunpack.c.l.b16 %v725
    %v749 = vunpack.c.l.b16 %v726
    %v750 = vunpack.c.l.b16 %v727
    %v751 = vunpack.c.l.b16 %v728
    %v752 = vunpack.c.l.b16 %v729
    %v753 = vunpack.c.l.b16 %v730
    %v754 = vpack.c.b16 %v747, %v746
    %v755 = vpack.c.b16 %v749, %v748
    %v756 = vpack.c.b16 %v751, %v750
    %v757 = vpack.c.b16 %v753, %v752
    %vm762 = vcmask 523264
    %v764 = vsel %vm762, %v715, 0
    %v767 = vsel %vm762, %v716, 0
    %v770 = vsel %vm762, %v717, 0
    %v773 = vsel %vm762, %v718, 0
    %v776 = vsel %vm762, %v719, 0
    %v779 = vsel %vm762, %v720, 0
    %v782 = vsel %vm762, %v721, 0
    %v785 = vsel %vm762, %v722, 0
    %787 = vmatprep.subr.bf16.mxu0 0
    %788 = vmatpush1.bf16.msra.mxu0 %v754
    %789 = vmatprep.subr.bf16.mxu0 0
    %790 = vmatpush1.bf16.msra.mxu0 %v755
    %791 = vmatprep.subr.bf16.mxu0 0
    %792 = vmatpush1.bf16.msra.mxu0 %v756
    %793 = vmatprep.subr.bf16.mxu0 0
    %794 = vmatpush1.bf16.msra.mxu0 %v757
    %795 = vmatprep.subr.bf16.mxu0 0
    %796 = vmatpush1.bf16.msra.mxu0 0
    %797 = vmatprep.subr.bf16.mxu0 0
    %798 = vmatpush1.bf16.msra.mxu0 0
    %799 = vmatprep.subr.bf16.mxu0 0
    %800 = vmatpush1.bf16.msra.mxu0 0
    %801 = vmatprep.subr.bf16.mxu0 0
    %802 = vmatpush1.bf16.msra.mxu0 0
    %803 = vmatprep.subr.bf16.mxu0 0
    %804 = vmatpush1.bf16.msra.mxu0 0
    %805 = vmatprep.subr.bf16.mxu0 0
    %806 = vmatpush1.bf16.msra.mxu0 0
    %807 = vmatprep.subr.bf16.mxu0 0
    %808 = vmatpush1.bf16.msra.mxu0 0
    %809 = vmatprep.subr.bf16.mxu0 0
    %810 = vmatpush1.bf16.msra.mxu0 0
    %811 = vmatprep.subr.bf16.mxu0 0
    %812 = vmatpush1.bf16.msra.mxu0 0
    %813 = vmatprep.subr.bf16.mxu0 0
    %814 = vmatpush1.bf16.msra.mxu0 0
    %815 = vmatprep.subr.bf16.mxu0 0
    %816 = vmatpush1.bf16.msra.mxu0 0
    %817 = vmatprep.subr.bf16.mxu0 0
    %818 = vmatpush1.bf16.msra.mxu0 0
    %819 = vmatprep.mubr.bf16.mxu0 0
    %820 = vmatmul.mubr.bf16.gmra.mrb[0].mxu0 %v764
    %v821 = vpop.f32.mrb[0].mxu0
    %v822 = vadd.f32 %v736, %v821
    %v823 = vpop.f32.mrb[0].mxu0
    %v824 = vpop.f32.mrb[0].mxu0
    %v825 = vadd.f32 %v736, %v824
    %v826 = vpop.f32.mrb[0].mxu0
    %827 = vmatprep.mubr.bf16.mxu0 0
    %828 = vmatmul.mubr.bf16.gmra.mrb[0].mxu0 %v767
    %v829 = vpop.f32.mrb[0].mxu0
    %v830 = vadd.f32 %v736, %v829
    %v831 = vpop.f32.mrb[0].mxu0
    %v832 = vpop.f32.mrb[0].mxu0
    %v833 = vadd.f32 %v736, %v832
    %v834 = vpop.f32.mrb[0].mxu0
    %835 = vmatprep.mubr.bf16.mxu0 0
    %836 = vmatmul.mubr.bf16.gmra.mrb[0].mxu0 %v770
    %v837 = vpop.f32.mrb[0].mxu0
    %v838 = vadd.f32 %v736, %v837
    %v839 = vpop.f32.mrb[0].mxu0
    %v840 = vpop.f32.mrb[0].mxu0
    %v841 = vadd.f32 %v736, %v840
    %v842 = vpop.f32.mrb[0].mxu0
    %843 = vmatprep.mubr.bf16.mxu0 0
    %844 = vmatmul.mubr.bf16.gmra.mrb[0].mxu0 %v773
    %v845 = vpop.f32.mrb[0].mxu0
    %v846 = vadd.f32 %v736, %v845
    %v847 = vpop.f32.mrb[0].mxu0
    %v848 = vpop.f32.mrb[0].mxu0
    %v849 = vadd.f32 %v736, %v848
    %v850 = vpop.f32.mrb[0].mxu0
    %851 = vmatprep.mubr.bf16.mxu0 0
    %852 = vmatmul.mubr.bf16.gmra.mrb[0].mxu0 %v776
    %v853 = vpop.f32.mrb[0].mxu0
    %v854 = vadd.f32 %v736, %v853
    %v855 = vpop.f32.mrb[0].mxu0
    %v856 = vpop.f32.mrb[0].mxu0
    %v857 = vadd.f32 %v736, %v856
    %v858 = vpop.f32.mrb[0].mxu0
    %859 = vmatprep.mubr.bf16.mxu0 0
    %860 = vmatmul.mubr.bf16.gmra.mrb[0].mxu0 %v779
    %v861 = vpop.f32.mrb[0].mxu0
    %v862 = vadd.f32 %v736, %v861
    %v863 = vpop.f32.mrb[0].mxu0
    %v864 = vpop.f32.mrb[0].mxu0
    %v865 = vadd.f32 %v736, %v864
    %v866 = vpop.f32.mrb[0].mxu0
    %867 = vmatprep.mubr.bf16.mxu0 0
    %868 = vmatmul.mubr.bf16.gmra.mrb[0].mxu0 %v782
    %v869 = vpop.f32.mrb[0].mxu0
    %v870 = vadd.f32 %v736, %v869
    %v871 = vpop.f32.mrb[0].mxu0
    %v872 = vpop.f32.mrb[0].mxu0
    %v873 = vadd.f32 %v736, %v872
    %v874 = vpop.f32.mrb[0].mxu0
    %875 = vmatprep.mubr.bf16.mxu0 0
    %876 = vmatmul.mubr.bf16.gmra.mrb[0].mxu0 %v785
    %v877 = vpop.f32.mrb[0].mxu0
    %v878 = vadd.f32 %v736, %v877
    %v879 = vpop.f32.mrb[0].mxu0
    %v880 = vpop.f32.mrb[0].mxu0
    %v881 = vadd.f32 %v736, %v880
    %v882 = vpop.f32.mrb[0].mxu0
    %883 = vdwg.mxu0
    %vm884 = vcmask 244736
    %885 = vst.msk [vmem:[#allocation5] sm:$0xff] %vm884, %v822
    %886 = vst.msk [vmem:[#allocation5 + $0x8] sm:$0xff] %vm884, %v825
    %887 = vst.msk [vmem:[#allocation5 + $0x10] sm:$0xff] %vm884, %v830
    %888 = vst.msk [vmem:[#allocation5 + $0x18] sm:$0xff] %vm884, %v833
    %889 = vst.msk [vmem:[#allocation5 + $0x20] sm:$0xff] %vm884, %v838
    %890 = vst.msk [vmem:[#allocation5 + $0x28] sm:$0xff] %vm884, %v841
    %891 = vst.msk [vmem:[#allocation5 + $0x30] sm:$0xff] %vm884, %v846
    %892 = vst.msk [vmem:[#allocation5 + $0x38] sm:$0xff] %vm884, %v849
    %893 = vst.msk [vmem:[#allocation5 + $0x40] sm:$0xff] %vm884, %v854
    %894 = vst.msk [vmem:[#allocation5 + $0x48] sm:$0xff] %vm884, %v857
    %895 = vst.msk [vmem:[#allocation5 + $0x50] sm:$0xff] %vm884, %v862
    %896 = vst.msk [vmem:[#allocation5 + $0x58] sm:$0xff] %vm884, %v865
    %897 = vst.msk [vmem:[#allocation5 + $0x60] sm:$0xff] %vm884, %v870
    %898 = vst.msk [vmem:[#allocation5 + $0x68] sm:$0xff] %vm884, %v873
    %899 = vst.msk [vmem:[#allocation5 + $0x70] sm:$0xff] %vm884, %v878
    %900 = vst.msk [vmem:[#allocation5 + $0x78] sm:$0xff] %vm884, %v881
    // Predicated region
    $region34: #{nn_clf_bert_forward.1} parent=1 // pred_check
      _
    $region35: #{nn_clf_bert_forward.1} parent=1 // pred_check_branch
      %902 = sbr.rel (0) target = $region37
    $region36: #{nn_clf_bert_forward.1} parent=1 // pred_region
      %s904 = ssub.s32 2048, 256
      %905 = vsyncadd [#allocation4], %s904
      %s906 = sshll.u32 [#allocation5], 4
      %s907 = int_to_ptr.vmem [resolvable:$true] %s906
      %912 = dma.vmem_to_hbm [thread:$0]  %s907, 256, %s7, [#allocation4], 128, 128, 8
    $region37: #{nn_clf_bert_forward.1} parent=1 // pred_fallthru
      _
    // Predicated region
    $region38: #{nn_clf_bert_forward.1} parent=1 // pred_check
      _
    $region39: #{nn_clf_bert_forward.1} parent=1 // pred_check_branch
      %914 = sbr.rel (0) target = $region41
    $region40: #{nn_clf_bert_forward.1} parent=1 // pred_region
      %915 = dma.done [#allocation4], 2048
    $region41: #{nn_clf_bert_forward.1} parent=1 // pred_fallthru
      _
    %916 = vsyncpa [#allocation3], 1
    %917 = vsyncpa [#allocation4], 1

</llo_original>
